<compile_context>
chip_gen: v6e
topology: v6e:2x2x1
jax: 0.10.0
libtpu: 0.0.40
codegen_flags: <defaults>
</compile_context>

<pallas_src>
import functools

import jax
import jax.numpy as jnp
from jax.experimental import pallas as pl
from jax.experimental.pallas import tpu as pltpu


def _round_up(x, n):
    return ((x + n - 1) // n) * n


def _lambda_kernel(y_ref, o_ref, *, a, b):
    # y_ref, o_ref: (2, TB) f32 in VMEM. Row 0 = position, row 1 = velocity.
    pos = y_ref[0:1, :]
    vel = y_ref[1:2, :]
    o_ref[0:1, :] = vel                        # d(position)/dt = velocity
    o_ref[1:2, :] = (-a) * pos + (-b) * vel    # d(velocity)/dt = -a*y0 - b*y1


def lambda_forward(t, y, *, m_param=1.0, k_param=1.0, d_param=1.0,
                   block_b=2048):
    """Pallas equivalent of Lambda.forward(t, y).

    t is accepted (and ignored) to match the PyTorch signature.
    y: [batch, 2] float32 (position, velocity).
    Returns [batch, 2] float32: (y[:, 1], -a*y[:, 0] - b*y[:, 1]).
    """
    del t  # unused, same as in the PyTorch module
    a = float(k_param) / float(m_param)
    b = float(d_param) / float(m_param)

    y = jnp.asarray(y, dtype=jnp.float32)
    batch = y.shape[0]

    # State-major, lane-dense layout: (2, B) with batch on the lane axis.
    yt = y.T

    # Lane-aligned batch tile, capped so per-block VMEM stays tiny
    # (2 * tb * 4 B per buffer -> far under v7x's 64 MiB / 32 MiB scoped).
    tb = min(block_b, _round_up(max(batch, 1), 128))
    padded = _round_up(max(batch, 1), tb)
    if padded != batch:
        yt = jnp.pad(yt, ((0, 0), (0, padded - batch)))

    out_t = pl.pallas_call(
        functools.partial(_lambda_kernel, a=a, b=b),
        out_shape=jax.ShapeDtypeStruct((2, padded), jnp.float32),
        grid=(padded // tb,),
        in_specs=[pl.BlockSpec((2, tb), lambda i: (0, i))],
        out_specs=pl.BlockSpec((2, tb), lambda i: (0, i)),
        compiler_params=pltpu.CompilerParams(
            dimension_semantics=("parallel",)),
    )(yt)

    # Back to the PyTorch layout [batch, 2].
    return out_t[:, :batch].T


if __name__ == "__main__":
    key = jax.random.PRNGKey(0)
    batch = 8
    y = jax.random.normal(key, (batch, 2), dtype=jnp.float32)
    t = jnp.float32(0.0)  # unused by the forward, kept for signature parity

    out = jax.block_until_ready(lambda_forward(t, y))

    # Pure-JAX reference (a = k/m = 1, b = d/m = 1).
    a_ref, b_ref = 1.0, 1.0
    ref = jnp.stack((y[:, 1], -a_ref * y[:, 0] - b_ref * y[:, 1]), axis=1)

    assert out.shape == (batch, 2)
    assert jnp.allclose(out, ref, atol=1e-6, rtol=1e-6)
    print("KERNEL_OK")
</pallas_src>

<mosaic_0001>
module attributes {stable_mosaic.version = 11 : i64} {
  func.func @_lambda_kernel(%arg0: i32, %arg1: memref<2x128xf32, #tpu.memory_space<vmem>>, %arg2: memref<2x128xf32, #tpu.memory_space<vmem>>) attributes {dimension_semantics = [#tpu.dimension_semantics<parallel>], iteration_bounds = array<i64: 1>, scalar_prefetch = 0 : i64, scratch_operands = 0 : i64, tpu.core_type = #tpu.core_type<tc>, window_params = [{transform_indices = @transform_0, window_bounds = array<i64: 2, 128>}, {transform_indices = @transform_1, window_bounds = array<i64: 2, 128>}]} {
    %c0 = arith.constant 0 : index
    %c0_0 = arith.constant 0 : index
    %0 = vector.load %arg1[%c0, %c0_0] : memref<2x128xf32, #tpu.memory_space<vmem>>, vector<1x128xf32>
    %c1 = arith.constant 1 : index
    %c0_1 = arith.constant 0 : index
    %1 = vector.load %arg1[%c1, %c0_1] : memref<2x128xf32, #tpu.memory_space<vmem>>, vector<1x128xf32>
    %c0_2 = arith.constant 0 : index
    %c0_3 = arith.constant 0 : index
    %2 = vector.load %arg2[%c0_2, %c0_3] : memref<2x128xf32, #tpu.memory_space<vmem>>, vector<1x128xf32>
    tpu.vector_store %arg2[%c0_2, %c0_3], %1 {strides = array<i32>} : memref<2x128xf32, #tpu.memory_space<vmem>>, vector<1x128xf32>,
    %cst = arith.constant -1.000000e+00 : f32
    %3 = vector.broadcast %cst : f32 to vector<1x128xf32>
    %4 = arith.mulf %3, %0 : vector<1x128xf32>
    %cst_4 = arith.constant -1.000000e+00 : f32
    %5 = vector.broadcast %cst_4 : f32 to vector<1x128xf32>
    %6 = arith.mulf %5, %1 : vector<1x128xf32>
    %7 = arith.addf %4, %6 : vector<1x128xf32>
    %c1_5 = arith.constant 1 : index
    %c0_6 = arith.constant 0 : index
    %8 = vector.load %arg2[%c1_5, %c0_6] : memref<2x128xf32, #tpu.memory_space<vmem>>, vector<1x128xf32>
    tpu.vector_store %arg2[%c1_5, %c0_6], %7 {strides = array<i32>} : memref<2x128xf32, #tpu.memory_space<vmem>>, vector<1x128xf32>,
    return
  }
  func.func @transform_0(%arg0: i32) -> (i32, i32) {
    %c0_i32 = arith.constant 0 : i32
    %c0_i32_0 = arith.constant 0 : i32
    return %c0_i32, %arg0 : i32, i32
  }
  func.func @transform_1(%arg0: i32) -> (i32, i32) {
    %c0_i32 = arith.constant 0 : i32
    %c0_i32_0 = arith.constant 0 : i32
    return %c0_i32, %arg0 : i32, i32
  }
}

</mosaic_0001>

<llo_original>
// kernel: tpu_custom_call.1
$region0: #{tpu_custom_call.1}
  #allocation0 [shape = 'u32[]', space=smem, size = 0x4, offset = 0x4, fixed_abs, tag = 'smem constant byte address 0x4 - core index']
  #allocation1 [shape = 'u32[144,128]{1,0:T(1,128)}', space=vmem, size = 0x12000, scoped, tag = 'internal scratch']
  %s0 = inlined_call_operand.hbm [shape: f32[2,128], index: 0, kind: input, shape index: {}]
  %s1 = inlined_call_operand.hbm [shape: f32[2,128], index: 1, kind: output, shape index: {}]
  %s2 = sld [smem:[#allocation0]]
  $region18: #{tpu_custom_call.1} parent=0
    _
  %s4 = ssub.s32 1, %s2
  %s5 = scalar_select 0, %s4, %s2
  $region1: #{tpu_custom_call.1} parent=0
    #allocation2 [shape = 'u8[1024]{0}', space=vmem, size = 0x400, scoped, tag = 'input window, operand 0, single buffered']
    #allocation3 [shape = 's32[1]{0}', space=sflag, size = 0x4, scoped, tag = 'scoped memory for tpu_custom_call.1']
    #allocation4 [shape = 's32[1]{0}', space=sflag, size = 0x4, scoped, tag = 'scoped memory for tpu_custom_call.1']
    #allocation5 [shape = 'u8[1024]{0}', space=vmem, size = 0x400, scoped, tag = 'output window, operand 0, single buffered']
    %6 = vsyncpa [#allocation3], 0
    %7 = vsyncpa [#allocation4], 0
    // Predicated region
    $region2: #{tpu_custom_call.1} parent=1 // pred_check
      _
    $region3: #{tpu_custom_call.1} parent=1 // pred_check_branch
      %9 = sbr.rel (0) target = $region5
    $region4: #{tpu_custom_call.1} parent=1 // pred_region
      %s11 = ssub.s32 32, 32
      %12 = vsyncadd [#allocation3], %s11
      %s14 = sshll.u32 [#allocation2], 4
      %s15 = int_to_ptr.vmem [resolvable:$true] %s14
      %17 = dma.hbm_to_vmem [thread:$0]  %s0, 32, %s15, [#allocation3]
    $region5: #{tpu_custom_call.1} parent=1 // pred_fallthru
      _
    // Predicated region
    $region6: #{tpu_custom_call.1} parent=1 // pred_check
      _
    $region7: #{tpu_custom_call.1} parent=1 // pred_check_branch
      %19 = sbr.rel (0) target = $region9
    $region8: #{tpu_custom_call.1} parent=1 // pred_region
      %20 = dma.done [#allocation3], 32
    $region9: #{tpu_custom_call.1} parent=1 // pred_fallthru
      _
    %v21 = vld [vmem:[#allocation2] sm:$0x1]
    %v22 = vld [vmem:[#allocation2 + $0x1] sm:$0x1]
    %23 = vst [vmem:[#allocation5] sm:$0x1] %v22
    %v24 = vmul.f32 %v21, -1.0
    %v25 = vmul.f32 %v22, -1.0
    %v26 = vadd.f32 %v24, %v25
    %27 = vst [vmem:[#allocation5 + $0x1] sm:$0x1] %v26
    // Predicated region
    $region10: #{tpu_custom_call.1} parent=1 // pred_check
      _
    $region11: #{tpu_custom_call.1} parent=1 // pred_check_branch
      %29 = sbr.rel (0) target = $region13
    $region12: #{tpu_custom_call.1} parent=1 // pred_region
      %s31 = ssub.s32 32, 32
      %32 = vsyncadd [#allocation4], %s31
      %s34 = sshll.u32 [#allocation5], 4
      %s35 = int_to_ptr.vmem [resolvable:$true] %s34
      %37 = dma.vmem_to_hbm [thread:$0]  %s35, 32, %s1, [#allocation4]
    $region13: #{tpu_custom_call.1} parent=1 // pred_fallthru
      _
    // Predicated region
    $region14: #{tpu_custom_call.1} parent=1 // pred_check
      _
    $region15: #{tpu_custom_call.1} parent=1 // pred_check_branch
      %39 = sbr.rel (0) target = $region17
    $region16: #{tpu_custom_call.1} parent=1 // pred_region
      %40 = dma.done [#allocation4], 32
    $region17: #{tpu_custom_call.1} parent=1 // pred_fallthru
      _
    %41 = vsyncpa [#allocation3], 1
    %42 = vsyncpa [#allocation4], 1

</llo_original>
